<compile_context>
chip_gen: v7x
topology: tpu7x:2x2x1
jax: 0.10.0
libtpu: 0.0.40
codegen_flags: <defaults>
</compile_context>

<pallas_src>
import functools

import jax
import jax.numpy as jnp
import numpy as np
from jax.experimental import pallas as pl
from jax.experimental.pallas import tpu as pltpu


def _rnn_classifier_kernel(layers_num,
                           x_ref, params_ref, fcw_ref, fcb_ref,
                           pred_ref):
    """Refs:
      x_ref      : [L, D]     VMEM   input sequence
      params_ref : [4, L, D]  VMEM   stacked (weight_x, weight_g, weight_u, mask)
      fcw_ref    : [1, D]     VMEM   fc.weight
      fcb_ref    : [1]        SMEM   fc.bias (scalar)
      pred_ref   : [L, 1]     VMEM   output = sigmoid(fc(x_bar))
    """
    L = layers_num  # trace-time constant; the recurrence is statically unrolled.

    # ---- t = 0 initialization (mirrors the PyTorch code before the loop) ----
    x0 = x_ref[0:1, :]
    h0 = jnp.tanh(x0 * params_ref[0, 0:1, :])                  # weight_x[0]
    xbar_rows = [x0, h0 * params_ref[1, 0:1, :] + x0]          # x_bar[0], x_bar[1]

    # ---- recurrence over time steps; all state stays in vregs -------------
    h_prev = h0
    for t in range(1, L):
        xt = x_ref[t:t + 1, :]
        wx_t = params_ref[0, t:t + 1, :]
        wg_t = params_ref[1, t:t + 1, :]
        wu_t = params_ref[2, t:t + 1, :]
        mt = params_ref[3, t:t + 1, :]

        xbar_t = xbar_rows[t]
        # x_trans = x[t]*m + x_bar[t]*(1-m)  ==  x_bar[t] + m*(x[t]-x_bar[t])
        x_trans = xbar_t + mt * (xt - xbar_t)
        u = jnp.tanh(x_trans * wx_t)
        f = jax.nn.sigmoid(h_prev + u * wu_t) * mt
        # h[t] = f*h[t-1] + (1-f)*u  ==  u + f*(h[t-1]-u)
        ht = u + f * (h_prev - u)
        # h[t] = h[0] + relu(h[t]-h[0])  ==  max(h[t], h[0])
        ht = jnp.maximum(ht, h0)
        if t < L - 1:
            xbar_rows.append(ht * wg_t + x_trans)
        h_prev = ht

    # ---- pred = sigmoid(fc(x_bar)); fc: Linear(D, 1) -----------------------
    # One broadcast-mul on the stacked [L, D] matrix + one lane reduction.
    xbar_mat = jnp.concatenate(xbar_rows[:L], axis=0)          # [L, D]
    logits = jnp.sum(xbar_mat * fcw_ref[...], axis=-1, keepdims=True)
    pred_ref[...] = jax.nn.sigmoid(logits + fcb_ref[0])


def rnn_classifier_forward(x, weight_x, weight_g, weight_u, mask, fc_w, fc_b):
    """x: [L, D]; parameters per RNN_classifier.__init__; returns pred [L, 1]."""
    L, D = x.shape
    # The PyTorch forward writes x_bar[1] unconditionally -> implicit L >= 2.
    assert L >= 2, "RNN_classifier forward assumes layers_num >= 2"

    # Collapse the four [L, D] parameter tensors into one operand (one DMA).
    params = jnp.stack(
        [weight_x, weight_g, weight_u, mask], axis=0).astype(jnp.float32)

    kernel = functools.partial(_rnn_classifier_kernel, L)
    vmem_spec = pl.BlockSpec(memory_space=pltpu.MemorySpace.VMEM)
    smem_spec = pl.BlockSpec(memory_space=pltpu.MemorySpace.SMEM)
    return pl.pallas_call(
        kernel,
        out_shape=jax.ShapeDtypeStruct((L, 1), jnp.float32),
        in_specs=[vmem_spec, vmem_spec, vmem_spec, smem_spec],
        out_specs=vmem_spec,
    )(x.astype(jnp.float32),
      params,
      fc_w.reshape(1, D).astype(jnp.float32),
      fc_b.reshape(1).astype(jnp.float32))


def rnn_classifier_ref(x, wx, wg, wu, mask, fc_w, fc_b):
    """Pure-JAX reference mirroring the PyTorch forward, for verification."""
    L, _ = x.shape
    xbar = [None] * L
    h = [None] * L
    xbar[0] = x[0]
    h[0] = jnp.tanh(x[0] * wx[0])
    xbar[1] = h[0] * wg[0] + x[0]
    for t in range(1, L):
        x_trans = x[t] * mask[t] + xbar[t] * (1.0 - mask[t])
        u = jnp.tanh(x_trans * wx[t])
        f = jax.nn.sigmoid(h[t - 1] + u * wu[t]) * mask[t]
        ht = f * h[t - 1] + (1.0 - f) * u
        h[t] = h[0] + jax.nn.relu(ht - h[0])
        if t < L - 1:
            xbar[t + 1] = h[t] * wg[t] + x_trans
    xbar_m = jnp.stack(xbar)
    return jax.nn.sigmoid(xbar_m @ fc_w.T + fc_b)


if __name__ == "__main__":
    layers_num = 12
    input_dim = 32

    key = jax.random.PRNGKey(0)
    kx, kwx, kwg, kwu, km, kfw, kfb = jax.random.split(key, 7)

    # Input: [L, D] as implied by forward (x[t] indexed along dim 0).
    x = jax.random.normal(kx, (layers_num, input_dim), dtype=jnp.float32)

    # Parameters (shapes per __init__). __init__ uses torch.ones; perturb
    # deterministically so the mask / gate branches are actually exercised.
    weight_x = 1.0 + 0.1 * jax.random.normal(kwx, (layers_num, input_dim), jnp.float32)
    weight_g = 1.0 + 0.1 * jax.random.normal(kwg, (layers_num, input_dim), jnp.float32)
    weight_u = 1.0 + 0.1 * jax.random.normal(kwu, (layers_num, input_dim), jnp.float32)
    mask = jax.nn.sigmoid(jax.random.normal(km, (layers_num, input_dim), jnp.float32))
    # fc = nn.Linear(input_dim, 1): weight [1, D], bias [1]
    bound = 1.0 / np.sqrt(input_dim)
    fc_w = jax.random.uniform(kfw, (1, input_dim), jnp.float32, -bound, bound)
    fc_b = jax.random.uniform(kfb, (1,), jnp.float32, -bound, bound)

    pred = rnn_classifier_forward(x, weight_x, weight_g, weight_u, mask, fc_w, fc_b)
    pred = jax.block_until_ready(pred)

    ref = rnn_classifier_ref(x, weight_x, weight_g, weight_u, mask, fc_w, fc_b)
    ref = jax.block_until_ready(ref)

    assert pred.shape == (layers_num, 1)
    np.testing.assert_allclose(np.asarray(pred), np.asarray(ref), rtol=1e-5, atol=1e-5)

    print("KERNEL_OK")
</pallas_src>

<mosaic_0001>
module attributes {stable_mosaic.version = 11 : i64} {
  func.func @_rnn_classifier_kernel(%arg0: memref<12x32xf32, #tpu.memory_space<vmem>>, %arg1: memref<4x12x32xf32, #tpu.memory_space<vmem>>, %arg2: memref<1x32xf32, #tpu.memory_space<vmem>>, %arg3: memref<1xf32, #tpu.memory_space<smem>>, %arg4: memref<12x1xf32, #tpu.memory_space<vmem>>) attributes {dimension_semantics = [], scalar_prefetch = 0 : i64, scratch_operands = 0 : i64, tpu.core_type = #tpu.core_type<tc>} {
    %c0 = arith.constant 0 : index
    %c0_0 = arith.constant 0 : index
    %0 = vector.load %arg0[%c0, %c0_0] : memref<12x32xf32, #tpu.memory_space<vmem>>, vector<1x32xf32>
    %c0_1 = arith.constant 0 : index
    %c0_2 = arith.constant 0 : index
    %c0_3 = arith.constant 0 : index
    %1 = vector.load %arg1[%c0_1, %c0_2, %c0_3] : memref<4x12x32xf32, #tpu.memory_space<vmem>>, vector<1x1x32xf32>
    %2 = vector.shape_cast %1 : vector<1x1x32xf32> to vector<1x32xf32>
    %3 = arith.mulf %0, %2 : vector<1x32xf32>
    %4 = math.tanh %3 : vector<1x32xf32>
    %c1 = arith.constant 1 : index
    %c0_4 = arith.constant 0 : index
    %c0_5 = arith.constant 0 : index
    %5 = vector.load %arg1[%c1, %c0_4, %c0_5] : memref<4x12x32xf32, #tpu.memory_space<vmem>>, vector<1x1x32xf32>
    %6 = vector.shape_cast %5 : vector<1x1x32xf32> to vector<1x32xf32>
    %7 = arith.mulf %4, %6 : vector<1x32xf32>
    %8 = arith.addf %7, %0 : vector<1x32xf32>
    %c1_6 = arith.constant 1 : index
    %c0_7 = arith.constant 0 : index
    %9 = vector.load %arg0[%c1_6, %c0_7] : memref<12x32xf32, #tpu.memory_space<vmem>>, vector<1x32xf32>
    %c0_8 = arith.constant 0 : index
    %c1_9 = arith.constant 1 : index
    %c0_10 = arith.constant 0 : index
    %10 = vector.load %arg1[%c0_8, %c1_9, %c0_10] : memref<4x12x32xf32, #tpu.memory_space<vmem>>, vector<1x1x32xf32>
    %11 = vector.shape_cast %10 : vector<1x1x32xf32> to vector<1x32xf32>
    %c1_11 = arith.constant 1 : index
    %c1_12 = arith.constant 1 : index
    %c0_13 = arith.constant 0 : index
    %12 = vector.load %arg1[%c1_11, %c1_12, %c0_13] : memref<4x12x32xf32, #tpu.memory_space<vmem>>, vector<1x1x32xf32>
    %13 = vector.shape_cast %12 : vector<1x1x32xf32> to vector<1x32xf32>
    %c2 = arith.constant 2 : index
    %c1_14 = arith.constant 1 : index
    %c0_15 = arith.constant 0 : index
    %14 = vector.load %arg1[%c2, %c1_14, %c0_15] : memref<4x12x32xf32, #tpu.memory_space<vmem>>, vector<1x1x32xf32>
    %15 = vector.shape_cast %14 : vector<1x1x32xf32> to vector<1x32xf32>
    %c3 = arith.constant 3 : index
    %c1_16 = arith.constant 1 : index
    %c0_17 = arith.constant 0 : index
    %16 = vector.load %arg1[%c3, %c1_16, %c0_17] : memref<4x12x32xf32, #tpu.memory_space<vmem>>, vector<1x1x32xf32>
    %17 = vector.shape_cast %16 : vector<1x1x32xf32> to vector<1x32xf32>
    %18 = arith.subf %9, %8 : vector<1x32xf32>
    %19 = arith.mulf %17, %18 : vector<1x32xf32>
    %20 = arith.addf %8, %19 : vector<1x32xf32>
    %21 = arith.mulf %20, %11 : vector<1x32xf32>
    %22 = math.tanh %21 : vector<1x32xf32>
    %23 = arith.mulf %22, %15 : vector<1x32xf32>
    %24 = arith.addf %4, %23 : vector<1x32xf32>
    %25 = arith.negf %24 : vector<1x32xf32>
    %26 = math.exp %25 : vector<1x32xf32>
    %cst = arith.constant 1.000000e+00 : f32
    %27 = vector.broadcast %cst : f32 to vector<1x32xf32>
    %28 = arith.addf %27, %26 : vector<1x32xf32>
    %29 = arith.divf %27, %28 : vector<1x32xf32>
    %30 = arith.mulf %29, %17 : vector<1x32xf32>
    %31 = arith.subf %4, %22 : vector<1x32xf32>
    %32 = arith.mulf %30, %31 : vector<1x32xf32>
    %33 = arith.addf %22, %32 : vector<1x32xf32>
    %34 = arith.maximumf %33, %4 : vector<1x32xf32>
    %35 = arith.mulf %34, %13 : vector<1x32xf32>
    %36 = arith.addf %35, %20 : vector<1x32xf32>
    %c2_18 = arith.constant 2 : index
    %c0_19 = arith.constant 0 : index
    %37 = vector.load %arg0[%c2_18, %c0_19] : memref<12x32xf32, #tpu.memory_space<vmem>>, vector<1x32xf32>
    %c0_20 = arith.constant 0 : index
    %c2_21 = arith.constant 2 : index
    %c0_22 = arith.constant 0 : index
    %38 = vector.load %arg1[%c0_20, %c2_21, %c0_22] : memref<4x12x32xf32, #tpu.memory_space<vmem>>, vector<1x1x32xf32>
    %39 = vector.shape_cast %38 : vector<1x1x32xf32> to vector<1x32xf32>
    %c1_23 = arith.constant 1 : index
    %c2_24 = arith.constant 2 : index
    %c0_25 = arith.constant 0 : index
    %40 = vector.load %arg1[%c1_23, %c2_24, %c0_25] : memref<4x12x32xf32, #tpu.memory_space<vmem>>, vector<1x1x32xf32>
    %41 = vector.shape_cast %40 : vector<1x1x32xf32> to vector<1x32xf32>
    %c2_26 = arith.constant 2 : index
    %c2_27 = arith.constant 2 : index
    %c0_28 = arith.constant 0 : index
    %42 = vector.load %arg1[%c2_26, %c2_27, %c0_28] : memref<4x12x32xf32, #tpu.memory_space<vmem>>, vector<1x1x32xf32>
    %43 = vector.shape_cast %42 : vector<1x1x32xf32> to vector<1x32xf32>
    %c3_29 = arith.constant 3 : index
    %c2_30 = arith.constant 2 : index
    %c0_31 = arith.constant 0 : index
    %44 = vector.load %arg1[%c3_29, %c2_30, %c0_31] : memref<4x12x32xf32, #tpu.memory_space<vmem>>, vector<1x1x32xf32>
    %45 = vector.shape_cast %44 : vector<1x1x32xf32> to vector<1x32xf32>
    %46 = arith.subf %37, %36 : vector<1x32xf32>
    %47 = arith.mulf %45, %46 : vector<1x32xf32>
    %48 = arith.addf %36, %47 : vector<1x32xf32>
    %49 = arith.mulf %48, %39 : vector<1x32xf32>
    %50 = math.tanh %49 : vector<1x32xf32>
    %51 = arith.mulf %50, %43 : vector<1x32xf32>
    %52 = arith.addf %34, %51 : vector<1x32xf32>
    %53 = arith.negf %52 : vector<1x32xf32>
    %54 = math.exp %53 : vector<1x32xf32>
    %cst_32 = arith.constant 1.000000e+00 : f32
    %55 = vector.broadcast %cst_32 : f32 to vector<1x32xf32>
    %56 = arith.addf %55, %54 : vector<1x32xf32>
    %57 = arith.divf %55, %56 : vector<1x32xf32>
    %58 = arith.mulf %57, %45 : vector<1x32xf32>
    %59 = arith.subf %34, %50 : vector<1x32xf32>
    %60 = arith.mulf %58, %59 : vector<1x32xf32>
    %61 = arith.addf %50, %60 : vector<1x32xf32>
    %62 = arith.maximumf %61, %4 : vector<1x32xf32>
    %63 = arith.mulf %62, %41 : vector<1x32xf32>
    %64 = arith.addf %63, %48 : vector<1x32xf32>
    %c3_33 = arith.constant 3 : index
    %c0_34 = arith.constant 0 : index
    %65 = vector.load %arg0[%c3_33, %c0_34] : memref<12x32xf32, #tpu.memory_space<vmem>>, vector<1x32xf32>
    %c0_35 = arith.constant 0 : index
    %c3_36 = arith.constant 3 : index
    %c0_37 = arith.constant 0 : index
    %66 = vector.load %arg1[%c0_35, %c3_36, %c0_37] : memref<4x12x32xf32, #tpu.memory_space<vmem>>, vector<1x1x32xf32>
    %67 = vector.shape_cast %66 : vector<1x1x32xf32> to vector<1x32xf32>
    %c1_38 = arith.constant 1 : index
    %c3_39 = arith.constant 3 : index
    %c0_40 = arith.constant 0 : index
    %68 = vector.load %arg1[%c1_38, %c3_39, %c0_40] : memref<4x12x32xf32, #tpu.memory_space<vmem>>, vector<1x1x32xf32>
    %69 = vector.shape_cast %68 : vector<1x1x32xf32> to vector<1x32xf32>
    %c2_41 = arith.constant 2 : index
    %c3_42 = arith.constant 3 : index
    %c0_43 = arith.constant 0 : index
    %70 = vector.load %arg1[%c2_41, %c3_42, %c0_43] : memref<4x12x32xf32, #tpu.memory_space<vmem>>, vector<1x1x32xf32>
    %71 = vector.shape_cast %70 : vector<1x1x32xf32> to vector<1x32xf32>
    %c3_44 = arith.constant 3 : index
    %c3_45 = arith.constant 3 : index
    %c0_46 = arith.constant 0 : index
    %72 = vector.load %arg1[%c3_44, %c3_45, %c0_46] : memref<4x12x32xf32, #tpu.memory_space<vmem>>, vector<1x1x32xf32>
    %73 = vector.shape_cast %72 : vector<1x1x32xf32> to vector<1x32xf32>
    %74 = arith.subf %65, %64 : vector<1x32xf32>
    %75 = arith.mulf %73, %74 : vector<1x32xf32>
    %76 = arith.addf %64, %75 : vector<1x32xf32>
    %77 = arith.mulf %76, %67 : vector<1x32xf32>
    %78 = math.tanh %77 : vector<1x32xf32>
    %79 = arith.mulf %78, %71 : vector<1x32xf32>
    %80 = arith.addf %62, %79 : vector<1x32xf32>
    %81 = arith.negf %80 : vector<1x32xf32>
    %82 = math.exp %81 : vector<1x32xf32>
    %cst_47 = arith.constant 1.000000e+00 : f32
    %83 = vector.broadcast %cst_47 : f32 to vector<1x32xf32>
    %84 = arith.addf %83, %82 : vector<1x32xf32>
    %85 = arith.divf %83, %84 : vector<1x32xf32>
    %86 = arith.mulf %85, %73 : vector<1x32xf32>
    %87 = arith.subf %62, %78 : vector<1x32xf32>
    %88 = arith.mulf %86, %87 : vector<1x32xf32>
    %89 = arith.addf %78, %88 : vector<1x32xf32>
    %90 = arith.maximumf %89, %4 : vector<1x32xf32>
    %91 = arith.mulf %90, %69 : vector<1x32xf32>
    %92 = arith.addf %91, %76 : vector<1x32xf32>
    %c4 = arith.constant 4 : index
    %c0_48 = arith.constant 0 : index
    %93 = vector.load %arg0[%c4, %c0_48] : memref<12x32xf32, #tpu.memory_space<vmem>>, vector<1x32xf32>
    %c0_49 = arith.constant 0 : index
    %c4_50 = arith.constant 4 : index
    %c0_51 = arith.constant 0 : index
    %94 = vector.load %arg1[%c0_49, %c4_50, %c0_51] : memref<4x12x32xf32, #tpu.memory_space<vmem>>, vector<1x1x32xf32>
    %95 = vector.shape_cast %94 : vector<1x1x32xf32> to vector<1x32xf32>
    %c1_52 = arith.constant 1 : index
    %c4_53 = arith.constant 4 : index
    %c0_54 = arith.constant 0 : index
    %96 = vector.load %arg1[%c1_52, %c4_53, %c0_54] : memref<4x12x32xf32, #tpu.memory_space<vmem>>, vector<1x1x32xf32>
    %97 = vector.shape_cast %96 : vector<1x1x32xf32> to vector<1x32xf32>
    %c2_55 = arith.constant 2 : index
    %c4_56 = arith.constant 4 : index
    %c0_57 = arith.constant 0 : index
    %98 = vector.load %arg1[%c2_55, %c4_56, %c0_57] : memref<4x12x32xf32, #tpu.memory_space<vmem>>, vector<1x1x32xf32>
    %99 = vector.shape_cast %98 : vector<1x1x32xf32> to vector<1x32xf32>
    %c3_58 = arith.constant 3 : index
    %c4_59 = arith.constant 4 : index
    %c0_60 = arith.constant 0 : index
    %100 = vector.load %arg1[%c3_58, %c4_59, %c0_60] : memref<4x12x32xf32, #tpu.memory_space<vmem>>, vector<1x1x32xf32>
    %101 = vector.shape_cast %100 : vector<1x1x32xf32> to vector<1x32xf32>
    %102 = arith.subf %93, %92 : vector<1x32xf32>
    %103 = arith.mulf %101, %102 : vector<1x32xf32>
    %104 = arith.addf %92, %103 : vector<1x32xf32>
    %105 = arith.mulf %104, %95 : vector<1x32xf32>
    %106 = math.tanh %105 : vector<1x32xf32>
    %107 = arith.mulf %106, %99 : vector<1x32xf32>
    %108 = arith.addf %90, %107 : vector<1x32xf32>
    %109 = arith.negf %108 : vector<1x32xf32>
    %110 = math.exp %109 : vector<1x32xf32>
    %cst_61 = arith.constant 1.000000e+00 : f32
    %111 = vector.broadcast %cst_61 : f32 to vector<1x32xf32>
    %112 = arith.addf %111, %110 : vector<1x32xf32>
    %113 = arith.divf %111, %112 : vector<1x32xf32>
    %114 = arith.mulf %113, %101 : vector<1x32xf32>
    %115 = arith.subf %90, %106 : vector<1x32xf32>
    %116 = arith.mulf %114, %115 : vector<1x32xf32>
    %117 = arith.addf %106, %116 : vector<1x32xf32>
    %118 = arith.maximumf %117, %4 : vector<1x32xf32>
    %119 = arith.mulf %118, %97 : vector<1x32xf32>
    %120 = arith.addf %119, %104 : vector<1x32xf32>
    %c5 = arith.constant 5 : index
    %c0_62 = arith.constant 0 : index
    %121 = vector.load %arg0[%c5, %c0_62] : memref<12x32xf32, #tpu.memory_space<vmem>>, vector<1x32xf32>
    %c0_63 = arith.constant 0 : index
    %c5_64 = arith.constant 5 : index
    %c0_65 = arith.constant 0 : index
    %122 = vector.load %arg1[%c0_63, %c5_64, %c0_65] : memref<4x12x32xf32, #tpu.memory_space<vmem>>, vector<1x1x32xf32>
    %123 = vector.shape_cast %122 : vector<1x1x32xf32> to vector<1x32xf32>
    %c1_66 = arith.constant 1 : index
    %c5_67 = arith.constant 5 : index
    %c0_68 = arith.constant 0 : index
    %124 = vector.load %arg1[%c1_66, %c5_67, %c0_68] : memref<4x12x32xf32, #tpu.memory_space<vmem>>, vector<1x1x32xf32>
    %125 = vector.shape_cast %124 : vector<1x1x32xf32> to vector<1x32xf32>
    %c2_69 = arith.constant 2 : index
    %c5_70 = arith.constant 5 : index
    %c0_71 = arith.constant 0 : index
    %126 = vector.load %arg1[%c2_69, %c5_70, %c0_71] : memref<4x12x32xf32, #tpu.memory_space<vmem>>, vector<1x1x32xf32>
    %127 = vector.shape_cast %126 : vector<1x1x32xf32> to vector<1x32xf32>
    %c3_72 = arith.constant 3 : index
    %c5_73 = arith.constant 5 : index
    %c0_74 = arith.constant 0 : index
    %128 = vector.load %arg1[%c3_72, %c5_73, %c0_74] : memref<4x12x32xf32, #tpu.memory_space<vmem>>, vector<1x1x32xf32>
    %129 = vector.shape_cast %128 : vector<1x1x32xf32> to vector<1x32xf32>
    %130 = arith.subf %121, %120 : vector<1x32xf32>
    %131 = arith.mulf %129, %130 : vector<1x32xf32>
    %132 = arith.addf %120, %131 : vector<1x32xf32>
    %133 = arith.mulf %132, %123 : vector<1x32xf32>
    %134 = math.tanh %133 : vector<1x32xf32>
    %135 = arith.mulf %134, %127 : vector<1x32xf32>
    %136 = arith.addf %118, %135 : vector<1x32xf32>
    %137 = arith.negf %136 : vector<1x32xf32>
    %138 = math.exp %137 : vector<1x32xf32>
    %cst_75 = arith.constant 1.000000e+00 : f32
    %139 = vector.broadcast %cst_75 : f32 to vector<1x32xf32>
    %140 = arith.addf %139, %138 : vector<1x32xf32>
    %141 = arith.divf %139, %140 : vector<1x32xf32>
    %142 = arith.mulf %141, %129 : vector<1x32xf32>
    %143 = arith.subf %118, %134 : vector<1x32xf32>
    %144 = arith.mulf %142, %143 : vector<1x32xf32>
    %145 = arith.addf %134, %144 : vector<1x32xf32>
    %146 = arith.maximumf %145, %4 : vector<1x32xf32>
    %147 = arith.mulf %146, %125 : vector<1x32xf32>
    %148 = arith.addf %147, %132 : vector<1x32xf32>
    %c6 = arith.constant 6 : index
    %c0_76 = arith.constant 0 : index
    %149 = vector.load %arg0[%c6, %c0_76] : memref<12x32xf32, #tpu.memory_space<vmem>>, vector<1x32xf32>
    %c0_77 = arith.constant 0 : index
    %c6_78 = arith.constant 6 : index
    %c0_79 = arith.constant 0 : index
    %150 = vector.load %arg1[%c0_77, %c6_78, %c0_79] : memref<4x12x32xf32, #tpu.memory_space<vmem>>, vector<1x1x32xf32>
    %151 = vector.shape_cast %150 : vector<1x1x32xf32> to vector<1x32xf32>
    %c1_80 = arith.constant 1 : index
    %c6_81 = arith.constant 6 : index
    %c0_82 = arith.constant 0 : index
    %152 = vector.load %arg1[%c1_80, %c6_81, %c0_82] : memref<4x12x32xf32, #tpu.memory_space<vmem>>, vector<1x1x32xf32>
    %153 = vector.shape_cast %152 : vector<1x1x32xf32> to vector<1x32xf32>
    %c2_83 = arith.constant 2 : index
    %c6_84 = arith.constant 6 : index
    %c0_85 = arith.constant 0 : index
    %154 = vector.load %arg1[%c2_83, %c6_84, %c0_85] : memref<4x12x32xf32, #tpu.memory_space<vmem>>, vector<1x1x32xf32>
    %155 = vector.shape_cast %154 : vector<1x1x32xf32> to vector<1x32xf32>
    %c3_86 = arith.constant 3 : index
    %c6_87 = arith.constant 6 : index
    %c0_88 = arith.constant 0 : index
    %156 = vector.load %arg1[%c3_86, %c6_87, %c0_88] : memref<4x12x32xf32, #tpu.memory_space<vmem>>, vector<1x1x32xf32>
    %157 = vector.shape_cast %156 : vector<1x1x32xf32> to vector<1x32xf32>
    %158 = arith.subf %149, %148 : vector<1x32xf32>
    %159 = arith.mulf %157, %158 : vector<1x32xf32>
    %160 = arith.addf %148, %159 : vector<1x32xf32>
    %161 = arith.mulf %160, %151 : vector<1x32xf32>
    %162 = math.tanh %161 : vector<1x32xf32>
    %163 = arith.mulf %162, %155 : vector<1x32xf32>
    %164 = arith.addf %146, %163 : vector<1x32xf32>
    %165 = arith.negf %164 : vector<1x32xf32>
    %166 = math.exp %165 : vector<1x32xf32>
    %cst_89 = arith.constant 1.000000e+00 : f32
    %167 = vector.broadcast %cst_89 : f32 to vector<1x32xf32>
    %168 = arith.addf %167, %166 : vector<1x32xf32>
    %169 = arith.divf %167, %168 : vector<1x32xf32>
    %170 = arith.mulf %169, %157 : vector<1x32xf32>
    %171 = arith.subf %146, %162 : vector<1x32xf32>
    %172 = arith.mulf %170, %171 : vector<1x32xf32>
    %173 = arith.addf %162, %172 : vector<1x32xf32>
    %174 = arith.maximumf %173, %4 : vector<1x32xf32>
    %175 = arith.mulf %174, %153 : vector<1x32xf32>
    %176 = arith.addf %175, %160 : vector<1x32xf32>
    %c7 = arith.constant 7 : index
    %c0_90 = arith.constant 0 : index
    %177 = vector.load %arg0[%c7, %c0_90] : memref<12x32xf32, #tpu.memory_space<vmem>>, vector<1x32xf32>
    %c0_91 = arith.constant 0 : index
    %c7_92 = arith.constant 7 : index
    %c0_93 = arith.constant 0 : index
    %178 = vector.load %arg1[%c0_91, %c7_92, %c0_93] : memref<4x12x32xf32, #tpu.memory_space<vmem>>, vector<1x1x32xf32>
    %179 = vector.shape_cast %178 : vector<1x1x32xf32> to vector<1x32xf32>
    %c1_94 = arith.constant 1 : index
    %c7_95 = arith.constant 7 : index
    %c0_96 = arith.constant 0 : index
    %180 = vector.load %arg1[%c1_94, %c7_95, %c0_96] : memref<4x12x32xf32, #tpu.memory_space<vmem>>, vector<1x1x32xf32>
    %181 = vector.shape_cast %180 : vector<1x1x32xf32> to vector<1x32xf32>
    %c2_97 = arith.constant 2 : index
    %c7_98 = arith.constant 7 : index
    %c0_99 = arith.constant 0 : index
    %182 = vector.load %arg1[%c2_97, %c7_98, %c0_99] : memref<4x12x32xf32, #tpu.memory_space<vmem>>, vector<1x1x32xf32>
    %183 = vector.shape_cast %182 : vector<1x1x32xf32> to vector<1x32xf32>
    %c3_100 = arith.constant 3 : index
    %c7_101 = arith.constant 7 : index
    %c0_102 = arith.constant 0 : index
    %184 = vector.load %arg1[%c3_100, %c7_101, %c0_102] : memref<4x12x32xf32, #tpu.memory_space<vmem>>, vector<1x1x32xf32>
    %185 = vector.shape_cast %184 : vector<1x1x32xf32> to vector<1x32xf32>
    %186 = arith.subf %177, %176 : vector<1x32xf32>
    %187 = arith.mulf %185, %186 : vector<1x32xf32>
    %188 = arith.addf %176, %187 : vector<1x32xf32>
    %189 = arith.mulf %188, %179 : vector<1x32xf32>
    %190 = math.tanh %189 : vector<1x32xf32>
    %191 = arith.mulf %190, %183 : vector<1x32xf32>
    %192 = arith.addf %174, %191 : vector<1x32xf32>
    %193 = arith.negf %192 : vector<1x32xf32>
    %194 = math.exp %193 : vector<1x32xf32>
    %cst_103 = arith.constant 1.000000e+00 : f32
    %195 = vector.broadcast %cst_103 : f32 to vector<1x32xf32>
    %196 = arith.addf %195, %194 : vector<1x32xf32>
    %197 = arith.divf %195, %196 : vector<1x32xf32>
    %198 = arith.mulf %197, %185 : vector<1x32xf32>
    %199 = arith.subf %174, %190 : vector<1x32xf32>
    %200 = arith.mulf %198, %199 : vector<1x32xf32>
    %201 = arith.addf %190, %200 : vector<1x32xf32>
    %202 = arith.maximumf %201, %4 : vector<1x32xf32>
    %203 = arith.mulf %202, %181 : vector<1x32xf32>
    %204 = arith.addf %203, %188 : vector<1x32xf32>
    %c8 = arith.constant 8 : index
    %c0_104 = arith.constant 0 : index
    %205 = vector.load %arg0[%c8, %c0_104] : memref<12x32xf32, #tpu.memory_space<vmem>>, vector<1x32xf32>
    %c0_105 = arith.constant 0 : index
    %c8_106 = arith.constant 8 : index
    %c0_107 = arith.constant 0 : index
    %206 = vector.load %arg1[%c0_105, %c8_106, %c0_107] : memref<4x12x32xf32, #tpu.memory_space<vmem>>, vector<1x1x32xf32>
    %207 = vector.shape_cast %206 : vector<1x1x32xf32> to vector<1x32xf32>
    %c1_108 = arith.constant 1 : index
    %c8_109 = arith.constant 8 : index
    %c0_110 = arith.constant 0 : index
    %208 = vector.load %arg1[%c1_108, %c8_109, %c0_110] : memref<4x12x32xf32, #tpu.memory_space<vmem>>, vector<1x1x32xf32>
    %209 = vector.shape_cast %208 : vector<1x1x32xf32> to vector<1x32xf32>
    %c2_111 = arith.constant 2 : index
    %c8_112 = arith.constant 8 : index
    %c0_113 = arith.constant 0 : index
    %210 = vector.load %arg1[%c2_111, %c8_112, %c0_113] : memref<4x12x32xf32, #tpu.memory_space<vmem>>, vector<1x1x32xf32>
    %211 = vector.shape_cast %210 : vector<1x1x32xf32> to vector<1x32xf32>
    %c3_114 = arith.constant 3 : index
    %c8_115 = arith.constant 8 : index
    %c0_116 = arith.constant 0 : index
    %212 = vector.load %arg1[%c3_114, %c8_115, %c0_116] : memref<4x12x32xf32, #tpu.memory_space<vmem>>, vector<1x1x32xf32>
    %213 = vector.shape_cast %212 : vector<1x1x32xf32> to vector<1x32xf32>
    %214 = arith.subf %205, %204 : vector<1x32xf32>
    %215 = arith.mulf %213, %214 : vector<1x32xf32>
    %216 = arith.addf %204, %215 : vector<1x32xf32>
    %217 = arith.mulf %216, %207 : vector<1x32xf32>
    %218 = math.tanh %217 : vector<1x32xf32>
    %219 = arith.mulf %218, %211 : vector<1x32xf32>
    %220 = arith.addf %202, %219 : vector<1x32xf32>
    %221 = arith.negf %220 : vector<1x32xf32>
    %222 = math.exp %221 : vector<1x32xf32>
    %cst_117 = arith.constant 1.000000e+00 : f32
    %223 = vector.broadcast %cst_117 : f32 to vector<1x32xf32>
    %224 = arith.addf %223, %222 : vector<1x32xf32>
    %225 = arith.divf %223, %224 : vector<1x32xf32>
    %226 = arith.mulf %225, %213 : vector<1x32xf32>
    %227 = arith.subf %202, %218 : vector<1x32xf32>
    %228 = arith.mulf %226, %227 : vector<1x32xf32>
    %229 = arith.addf %218, %228 : vector<1x32xf32>
    %230 = arith.maximumf %229, %4 : vector<1x32xf32>
    %231 = arith.mulf %230, %209 : vector<1x32xf32>
    %232 = arith.addf %231, %216 : vector<1x32xf32>
    %c9 = arith.constant 9 : index
    %c0_118 = arith.constant 0 : index
    %233 = vector.load %arg0[%c9, %c0_118] : memref<12x32xf32, #tpu.memory_space<vmem>>, vector<1x32xf32>
    %c0_119 = arith.constant 0 : index
    %c9_120 = arith.constant 9 : index
    %c0_121 = arith.constant 0 : index
    %234 = vector.load %arg1[%c0_119, %c9_120, %c0_121] : memref<4x12x32xf32, #tpu.memory_space<vmem>>, vector<1x1x32xf32>
    %235 = vector.shape_cast %234 : vector<1x1x32xf32> to vector<1x32xf32>
    %c1_122 = arith.constant 1 : index
    %c9_123 = arith.constant 9 : index
    %c0_124 = arith.constant 0 : index
    %236 = vector.load %arg1[%c1_122, %c9_123, %c0_124] : memref<4x12x32xf32, #tpu.memory_space<vmem>>, vector<1x1x32xf32>
    %237 = vector.shape_cast %236 : vector<1x1x32xf32> to vector<1x32xf32>
    %c2_125 = arith.constant 2 : index
    %c9_126 = arith.constant 9 : index
    %c0_127 = arith.constant 0 : index
    %238 = vector.load %arg1[%c2_125, %c9_126, %c0_127] : memref<4x12x32xf32, #tpu.memory_space<vmem>>, vector<1x1x32xf32>
    %239 = vector.shape_cast %238 : vector<1x1x32xf32> to vector<1x32xf32>
    %c3_128 = arith.constant 3 : index
    %c9_129 = arith.constant 9 : index
    %c0_130 = arith.constant 0 : index
    %240 = vector.load %arg1[%c3_128, %c9_129, %c0_130] : memref<4x12x32xf32, #tpu.memory_space<vmem>>, vector<1x1x32xf32>
    %241 = vector.shape_cast %240 : vector<1x1x32xf32> to vector<1x32xf32>
    %242 = arith.subf %233, %232 : vector<1x32xf32>
    %243 = arith.mulf %241, %242 : vector<1x32xf32>
    %244 = arith.addf %232, %243 : vector<1x32xf32>
    %245 = arith.mulf %244, %235 : vector<1x32xf32>
    %246 = math.tanh %245 : vector<1x32xf32>
    %247 = arith.mulf %246, %239 : vector<1x32xf32>
    %248 = arith.addf %230, %247 : vector<1x32xf32>
    %249 = arith.negf %248 : vector<1x32xf32>
    %250 = math.exp %249 : vector<1x32xf32>
    %cst_131 = arith.constant 1.000000e+00 : f32
    %251 = vector.broadcast %cst_131 : f32 to vector<1x32xf32>
    %252 = arith.addf %251, %250 : vector<1x32xf32>
    %253 = arith.divf %251, %252 : vector<1x32xf32>
    %254 = arith.mulf %253, %241 : vector<1x32xf32>
    %255 = arith.subf %230, %246 : vector<1x32xf32>
    %256 = arith.mulf %254, %255 : vector<1x32xf32>
    %257 = arith.addf %246, %256 : vector<1x32xf32>
    %258 = arith.maximumf %257, %4 : vector<1x32xf32>
    %259 = arith.mulf %258, %237 : vector<1x32xf32>
    %260 = arith.addf %259, %244 : vector<1x32xf32>
    %c10 = arith.constant 10 : index
    %c0_132 = arith.constant 0 : index
    %261 = vector.load %arg0[%c10, %c0_132] : memref<12x32xf32, #tpu.memory_space<vmem>>, vector<1x32xf32>
    %c0_133 = arith.constant 0 : index
    %c10_134 = arith.constant 10 : index
    %c0_135 = arith.constant 0 : index
    %262 = vector.load %arg1[%c0_133, %c10_134, %c0_135] : memref<4x12x32xf32, #tpu.memory_space<vmem>>, vector<1x1x32xf32>
    %263 = vector.shape_cast %262 : vector<1x1x32xf32> to vector<1x32xf32>
    %c1_136 = arith.constant 1 : index
    %c10_137 = arith.constant 10 : index
    %c0_138 = arith.constant 0 : index
    %264 = vector.load %arg1[%c1_136, %c10_137, %c0_138] : memref<4x12x32xf32, #tpu.memory_space<vmem>>, vector<1x1x32xf32>
    %265 = vector.shape_cast %264 : vector<1x1x32xf32> to vector<1x32xf32>
    %c2_139 = arith.constant 2 : index
    %c10_140 = arith.constant 10 : index
    %c0_141 = arith.constant 0 : index
    %266 = vector.load %arg1[%c2_139, %c10_140, %c0_141] : memref<4x12x32xf32, #tpu.memory_space<vmem>>, vector<1x1x32xf32>
    %267 = vector.shape_cast %266 : vector<1x1x32xf32> to vector<1x32xf32>
    %c3_142 = arith.constant 3 : index
    %c10_143 = arith.constant 10 : index
    %c0_144 = arith.constant 0 : index
    %268 = vector.load %arg1[%c3_142, %c10_143, %c0_144] : memref<4x12x32xf32, #tpu.memory_space<vmem>>, vector<1x1x32xf32>
    %269 = vector.shape_cast %268 : vector<1x1x32xf32> to vector<1x32xf32>
    %270 = arith.subf %261, %260 : vector<1x32xf32>
    %271 = arith.mulf %269, %270 : vector<1x32xf32>
    %272 = arith.addf %260, %271 : vector<1x32xf32>
    %273 = arith.mulf %272, %263 : vector<1x32xf32>
    %274 = math.tanh %273 : vector<1x32xf32>
    %275 = arith.mulf %274, %267 : vector<1x32xf32>
    %276 = arith.addf %258, %275 : vector<1x32xf32>
    %277 = arith.negf %276 : vector<1x32xf32>
    %278 = math.exp %277 : vector<1x32xf32>
    %cst_145 = arith.constant 1.000000e+00 : f32
    %279 = vector.broadcast %cst_145 : f32 to vector<1x32xf32>
    %280 = arith.addf %279, %278 : vector<1x32xf32>
    %281 = arith.divf %279, %280 : vector<1x32xf32>
    %282 = arith.mulf %281, %269 : vector<1x32xf32>
    %283 = arith.subf %258, %274 : vector<1x32xf32>
    %284 = arith.mulf %282, %283 : vector<1x32xf32>
    %285 = arith.addf %274, %284 : vector<1x32xf32>
    %286 = arith.maximumf %285, %4 : vector<1x32xf32>
    %287 = arith.mulf %286, %265 : vector<1x32xf32>
    %288 = arith.addf %287, %272 : vector<1x32xf32>
    %289 = tpu.concatenate %0, %8, %36, %64, %92, %120, %148, %176, %204, %232, %260, %288 in 0 : vector<1x32xf32>, vector<1x32xf32>, vector<1x32xf32>, vector<1x32xf32>, vector<1x32xf32>, vector<1x32xf32>, vector<1x32xf32>, vector<1x32xf32>, vector<1x32xf32>, vector<1x32xf32>, vector<1x32xf32>, vector<1x32xf32> -> vector<12x32xf32>
    %c0_146 = arith.constant 0 : index
    %c0_147 = arith.constant 0 : index
    %290 = vector.load %arg2[%c0_146, %c0_147] : memref<1x32xf32, #tpu.memory_space<vmem>>, vector<1x32xf32>
    %291 = vector.broadcast %290 : vector<1x32xf32> to vector<12x32xf32>
    %292 = arith.mulf %289, %291 : vector<12x32xf32>
    %cst_148 = arith.constant dense<0.000000e+00> : vector<12xf32>
    %293 = vector.multi_reduction <add>, %292, %cst_148 [1] : vector<12x32xf32> to vector<12xf32>
    %294 = vector.shape_cast %293 : vector<12xf32> to vector<12x1xf32>
    %c0_149 = arith.constant 0 : index
    %295 = memref.load %arg3[%c0_149] : memref<1xf32, #tpu.memory_space<smem>>
    %296 = vector.broadcast %295 : f32 to vector<12x1xf32>
    %297 = arith.addf %294, %296 : vector<12x1xf32>
    %298 = arith.negf %297 : vector<12x1xf32>
    %299 = math.exp %298 : vector<12x1xf32>
    %cst_150 = arith.constant 1.000000e+00 : f32
    %300 = vector.broadcast %cst_150 : f32 to vector<12x1xf32>
    %301 = arith.addf %300, %299 : vector<12x1xf32>
    %302 = arith.divf %300, %301 : vector<12x1xf32>
    %c0_151 = arith.constant 0 : index
    %c0_152 = arith.constant 0 : index
    %303 = vector.load %arg4[%c0_151, %c0_152] : memref<12x1xf32, #tpu.memory_space<vmem>>, vector<12x1xf32>
    tpu.vector_store %arg4[%c0_151, %c0_152], %302 {strides = array<i32>} : memref<12x1xf32, #tpu.memory_space<vmem>>, vector<12x1xf32>,
    return
  }
}

</mosaic_0001>

<llo_original>
// kernel: tpu_custom_call.1
$region0: #{tpu_custom_call.1}
  #allocation0 [shape = 'u32[]', space=smem, size = 0x4, offset = 0x4, fixed_abs, tag = 'smem constant byte address 0x4 - core index']
  #allocation1 [shape = 'u32[144,128]{1,0:T(1,128)}', space=vmem, size = 0x12000, scoped, tag = 'internal scratch']
  #allocation2 [shape = 'f32[1]{0:T(128)S(6)}', space=smem, size = 0x200, scoped, tag = 'scoped memory for tpu_custom_call.1']
  %s0 = inlined_call_operand.vmem [shape: f32[12,32], index: 0, kind: input, shape index: {}]
  %s1 = inlined_call_operand.vmem [shape: f32[4,12,32], index: 1, kind: input, shape index: {}]
  %s2 = inlined_call_operand.vmem [shape: f32[1,32], index: 2, kind: input, shape index: {}]
  %s3 = inlined_call_operand.<no memory space> [shape: f32[1], index: 3, kind: input, shape index: {}]
  %s4 = inlined_call_operand.vmem [shape: f32[12,1], index: 4, kind: output, shape index: {}]
  %s5 = sld [smem:[#allocation0]]
  $region26: #{tpu_custom_call.1} parent=0
    _
  %s7 = ssub.s32 1, %s5
  %s8 = scalar_select 0, %s7, %s5
  %9 = sst [smem:[#allocation2]] %s3
  // Predicated region
  $region2: #{tpu_custom_call.1} parent=0 // pred_check
    _
  $region3: #{tpu_custom_call.1} parent=0 // pred_check_branch
    %11 = sbr.rel (0) target = $region5
  $region4: #{tpu_custom_call.1} parent=0 // pred_region
    _
  $region5: #{tpu_custom_call.1} parent=0 // pred_fallthru
    _
  // Predicated region
  $region6: #{tpu_custom_call.1} parent=0 // pred_check
    _
  $region7: #{tpu_custom_call.1} parent=0 // pred_check_branch
    %13 = sbr.rel (0) target = $region9
  $region8: #{tpu_custom_call.1} parent=0 // pred_region
    _
  $region9: #{tpu_custom_call.1} parent=0 // pred_fallthru
    _
  // Predicated region
  $region10: #{tpu_custom_call.1} parent=0 // pred_check
    _
  $region11: #{tpu_custom_call.1} parent=0 // pred_check_branch
    %15 = sbr.rel (0) target = $region13
  $region12: #{tpu_custom_call.1} parent=0 // pred_region
    _
  $region13: #{tpu_custom_call.1} parent=0 // pred_fallthru
    _
  // Predicated region
  $region14: #{tpu_custom_call.1} parent=0 // pred_check
    _
  $region15: #{tpu_custom_call.1} parent=0 // pred_check_branch
    %17 = sbr.rel (0) target = $region17
  $region16: #{tpu_custom_call.1} parent=0 // pred_region
    _
  $region17: #{tpu_custom_call.1} parent=0 // pred_fallthru
    _
  %v18 = vld [vmem:[%s0] sm:$0x1]
  %v19 = vld [vmem:[%s1] sm:$0x1]
  %v20 = vmul.f32 %v18, %v19
  %v21 = vtanh.pop %v20
  %s22 = scalar_lea.vmem %s1, 16
  %v23 = vld [vmem:[%s22] sm:$0x1]
  %v24 = vmul.f32 %v21, %v23
  %v25 = vadd.f32 %v24, %v18
  %v26 = vld [vmem:[%s0 + $0x1] sm:$0x1]
  %v27 = vld [vmem:[%s1 + $0x1] sm:$0x1]
  %v28 = vld [vmem:[%s22 + $0x1] sm:$0x1]
  %s29 = scalar_lea.vmem %s1, 32
  %v30 = vld [vmem:[%s29 + $0x1] sm:$0x1]
  %s31 = scalar_lea.vmem %s1, 48
  %v32 = vld [vmem:[%s31 + $0x1] sm:$0x1]
  %v33 = vsub.f32 %v26, %v25
  %v34 = vmul.f32 %v32, %v33
  %v35 = vadd.f32 %v25, %v34
  %v36 = vmul.f32 %v35, %v27
  %v37 = vtanh.pop %v36
  %v38 = vmul.f32 %v37, %v30
  %v39 = vadd.f32 %v21, %v38
  %v40 = vxor.u32 %v39, 2147483648
  %v41 = vmul.f32 %v40, 1.442695
  %v42 = vpow.pop %v41
  %v43 = vadd.f32 %v42, 1.0
  %v44 = vrcp.pop %v43
  %v45 = vmul.f32 1.0, %v44
  %v46 = vmul.f32 %v45, %v32
  %v47 = vsub.f32 %v21, %v37
  %v48 = vmul.f32 %v46, %v47
  %v49 = vadd.f32 %v37, %v48
  %v50 = vmax.f32 %v49, %v21
  %v51 = vmul.f32 %v50, %v28
  %v52 = vadd.f32 %v51, %v35
  %v53 = vld [vmem:[%s0 + $0x2] sm:$0x1]
  %v54 = vld [vmem:[%s1 + $0x2] sm:$0x1]
  %v55 = vld [vmem:[%s22 + $0x2] sm:$0x1]
  %v56 = vld [vmem:[%s29 + $0x2] sm:$0x1]
  %v57 = vld [vmem:[%s31 + $0x2] sm:$0x1]
  %v58 = vsub.f32 %v53, %v52
  %v59 = vmul.f32 %v57, %v58
  %v60 = vadd.f32 %v52, %v59
  %v61 = vmul.f32 %v60, %v54
  %v62 = vtanh.pop %v61
  %v63 = vmul.f32 %v62, %v56
  %v64 = vadd.f32 %v50, %v63
  %v65 = vxor.u32 %v64, 2147483648
  %v66 = vmul.f32 %v65, 1.442695
  %v67 = vpow.pop %v66
  %v68 = vadd.f32 %v67, 1.0
  %v69 = vrcp.pop %v68
  %v70 = vmul.f32 1.0, %v69
  %v71 = vmul.f32 %v70, %v57
  %v72 = vsub.f32 %v50, %v62
  %v73 = vmul.f32 %v71, %v72
  %v74 = vadd.f32 %v62, %v73
  %v75 = vmax.f32 %v74, %v21
  %v76 = vmul.f32 %v75, %v55
  %v77 = vadd.f32 %v76, %v60
  %v78 = vld [vmem:[%s0 + $0x3] sm:$0x1]
  %v79 = vld [vmem:[%s1 + $0x3] sm:$0x1]
  %v80 = vld [vmem:[%s22 + $0x3] sm:$0x1]
  %v81 = vld [vmem:[%s29 + $0x3] sm:$0x1]
  %v82 = vld [vmem:[%s31 + $0x3] sm:$0x1]
  %v83 = vsub.f32 %v78, %v77
  %v84 = vmul.f32 %v82, %v83
  %v85 = vadd.f32 %v77, %v84
  %v86 = vmul.f32 %v85, %v79
  %v87 = vtanh.pop %v86
  %v88 = vmul.f32 %v87, %v81
  %v89 = vadd.f32 %v75, %v88
  %v90 = vxor.u32 %v89, 2147483648
  %v91 = vmul.f32 %v90, 1.442695
  %v92 = vpow.pop %v91
  %v93 = vadd.f32 %v92, 1.0
  %v94 = vrcp.pop %v93
  %v95 = vmul.f32 1.0, %v94
  %v96 = vmul.f32 %v95, %v82
  %v97 = vsub.f32 %v75, %v87
  %v98 = vmul.f32 %v96, %v97
  %v99 = vadd.f32 %v87, %v98
  %v100 = vmax.f32 %v99, %v21
  %v101 = vmul.f32 %v100, %v80
  %v102 = vadd.f32 %v101, %v85
  %v103 = vld [vmem:[%s0 + $0x4] sm:$0x1]
  %v104 = vld [vmem:[%s1 + $0x4] sm:$0x1]
  %v105 = vld [vmem:[%s22 + $0x4] sm:$0x1]
  %v106 = vld [vmem:[%s29 + $0x4] sm:$0x1]
  %v107 = vld [vmem:[%s31 + $0x4] sm:$0x1]
  %v108 = vsub.f32 %v103, %v102
  %v109 = vmul.f32 %v107, %v108
  %v110 = vadd.f32 %v102, %v109
  %v111 = vmul.f32 %v110, %v104
  %v112 = vtanh.pop %v111
  %v113 = vmul.f32 %v112, %v106
  %v114 = vadd.f32 %v100, %v113
  %v115 = vxor.u32 %v114, 2147483648
  %v116 = vmul.f32 %v115, 1.442695
  %v117 = vpow.pop %v116
  %v118 = vadd.f32 %v117, 1.0
  %v119 = vrcp.pop %v118
  %v120 = vmul.f32 1.0, %v119
  %v121 = vmul.f32 %v120, %v107
  %v122 = vsub.f32 %v100, %v112
  %v123 = vmul.f32 %v121, %v122
  %v124 = vadd.f32 %v112, %v123
  %v125 = vmax.f32 %v124, %v21
  %v126 = vmul.f32 %v125, %v105
  %v127 = vadd.f32 %v126, %v110
  %v128 = vld [vmem:[%s0 + $0x5] sm:$0x1]
  %v129 = vld [vmem:[%s1 + $0x5] sm:$0x1]
  %v130 = vld [vmem:[%s22 + $0x5] sm:$0x1]
  %v131 = vld [vmem:[%s29 + $0x5] sm:$0x1]
  %v132 = vld [vmem:[%s31 + $0x5] sm:$0x1]
  %v133 = vsub.f32 %v128, %v127
  %v134 = vmul.f32 %v132, %v133
  %v135 = vadd.f32 %v127, %v134
  %v136 = vmul.f32 %v135, %v129
  %v137 = vtanh.pop %v136
  %v138 = vmul.f32 %v137, %v131
  %v139 = vadd.f32 %v125, %v138
  %v140 = vxor.u32 %v139, 2147483648
  %v141 = vmul.f32 %v140, 1.442695
  %v142 = vpow.pop %v141
  %v143 = vadd.f32 %v142, 1.0
  %v144 = vrcp.pop %v143
  %v145 = vmul.f32 1.0, %v144
  %v146 = vmul.f32 %v145, %v132
  %v147 = vsub.f32 %v125, %v137
  %v148 = vmul.f32 %v146, %v147
  %v149 = vadd.f32 %v137, %v148
  %v150 = vmax.f32 %v149, %v21
  %v151 = vmul.f32 %v150, %v130
  %v152 = vadd.f32 %v151, %v135
  %v153 = vld [vmem:[%s0 + $0x6] sm:$0x1]
  %v154 = vld [vmem:[%s1 + $0x6] sm:$0x1]
  %v155 = vld [vmem:[%s22 + $0x6] sm:$0x1]
  %v156 = vld [vmem:[%s29 + $0x6] sm:$0x1]
  %v157 = vld [vmem:[%s31 + $0x6] sm:$0x1]
  %v158 = vsub.f32 %v153, %v152
  %v159 = vmul.f32 %v157, %v158
  %v160 = vadd.f32 %v152, %v159
  %v161 = vmul.f32 %v160, %v154
  %v162 = vtanh.pop %v161
  %v163 = vmul.f32 %v162, %v156
  %v164 = vadd.f32 %v150, %v163
  %v165 = vxor.u32 %v164, 2147483648
  %v166 = vmul.f32 %v165, 1.442695
  %v167 = vpow.pop %v166
  %v168 = vadd.f32 %v167, 1.0
  %v169 = vrcp.pop %v168
  %v170 = vmul.f32 1.0, %v169
  %v171 = vmul.f32 %v170, %v157
  %v172 = vsub.f32 %v150, %v162
  %v173 = vmul.f32 %v171, %v172
  %v174 = vadd.f32 %v162, %v173
  %v175 = vmax.f32 %v174, %v21
  %v176 = vmul.f32 %v175, %v155
  %v177 = vadd.f32 %v176, %v160
  %v178 = vld [vmem:[%s0 + $0x7] sm:$0x1]
  %v179 = vld [vmem:[%s1 + $0x7] sm:$0x1]
  %v180 = vld [vmem:[%s22 + $0x7] sm:$0x1]
  %v181 = vld [vmem:[%s29 + $0x7] sm:$0x1]
  %v182 = vld [vmem:[%s31 + $0x7] sm:$0x1]
  %v183 = vsub.f32 %v178, %v177
  %v184 = vmul.f32 %v182, %v183
  %v185 = vadd.f32 %v177, %v184
  %v186 = vmul.f32 %v185, %v179
  %v187 = vtanh.pop %v186
  %v188 = vmul.f32 %v187, %v181
  %v189 = vadd.f32 %v175, %v188
  %v190 = vxor.u32 %v189, 2147483648
  %v191 = vmul.f32 %v190, 1.442695
  %v192 = vpow.pop %v191
  %v193 = vadd.f32 %v192, 1.0
  %v194 = vrcp.pop %v193
  %v195 = vmul.f32 1.0, %v194
  %v196 = vmul.f32 %v195, %v182
  %v197 = vsub.f32 %v175, %v187
  %v198 = vmul.f32 %v196, %v197
  %v199 = vadd.f32 %v187, %v198
  %v200 = vmax.f32 %v199, %v21
  %v201 = vmul.f32 %v200, %v180
  %v202 = vadd.f32 %v201, %v185
  %v203 = vld [vmem:[%s0 + $0x8] sm:$0x1]
  %v204 = vld [vmem:[%s1 + $0x8] sm:$0x1]
  %v205 = vld [vmem:[%s22 + $0x8] sm:$0x1]
  %v206 = vld [vmem:[%s29 + $0x8] sm:$0x1]
  %v207 = vld [vmem:[%s31 + $0x8] sm:$0x1]
  %v208 = vsub.f32 %v203, %v202
  %v209 = vmul.f32 %v207, %v208
  %v210 = vadd.f32 %v202, %v209
  %v211 = vmul.f32 %v210, %v204
  %v212 = vtanh.pop %v211
  %v213 = vmul.f32 %v212, %v206
  %v214 = vadd.f32 %v200, %v213
  %v215 = vxor.u32 %v214, 2147483648
  %v216 = vmul.f32 %v215, 1.442695
  %v217 = vpow.pop %v216
  %v218 = vadd.f32 %v217, 1.0
  %v219 = vrcp.pop %v218
  %v220 = vmul.f32 1.0, %v219
  %v221 = vmul.f32 %v220, %v207
  %v222 = vsub.f32 %v200, %v212
  %v223 = vmul.f32 %v221, %v222
  %v224 = vadd.f32 %v212, %v223
  %v225 = vmax.f32 %v224, %v21
  %v226 = vmul.f32 %v225, %v205
  %v227 = vadd.f32 %v226, %v210
  %v228 = vld [vmem:[%s0 + $0x9] sm:$0x1]
  %v229 = vld [vmem:[%s1 + $0x9] sm:$0x1]
  %v230 = vld [vmem:[%s22 + $0x9] sm:$0x1]
  %v231 = vld [vmem:[%s29 + $0x9] sm:$0x1]
  %v232 = vld [vmem:[%s31 + $0x9] sm:$0x1]
  %v233 = vsub.f32 %v228, %v227
  %v234 = vmul.f32 %v232, %v233
  %v235 = vadd.f32 %v227, %v234
  %v236 = vmul.f32 %v235, %v229
  %v237 = vtanh.pop %v236
  %v238 = vmul.f32 %v237, %v231
  %v239 = vadd.f32 %v225, %v238
  %v240 = vxor.u32 %v239, 2147483648
  %v241 = vmul.f32 %v240, 1.442695
  %v242 = vpow.pop %v241
  %v243 = vadd.f32 %v242, 1.0
  %v244 = vrcp.pop %v243
  %v245 = vmul.f32 1.0, %v244
  %v246 = vmul.f32 %v245, %v232
  %v247 = vsub.f32 %v225, %v237
  %v248 = vmul.f32 %v246, %v247
  %v249 = vadd.f32 %v237, %v248
  %v250 = vmax.f32 %v249, %v21
  %v251 = vmul.f32 %v250, %v230
  %v252 = vadd.f32 %v251, %v235
  %v253 = vld [vmem:[%s0 + $0xa] sm:$0x1]
  %v254 = vld [vmem:[%s1 + $0xa] sm:$0x1]
  %v255 = vld [vmem:[%s22 + $0xa] sm:$0x1]
  %v256 = vld [vmem:[%s29 + $0xa] sm:$0x1]
  %v257 = vld [vmem:[%s31 + $0xa] sm:$0x1]
  %v258 = vsub.f32 %v253, %v252
  %v259 = vmul.f32 %v257, %v258
  %v260 = vadd.f32 %v252, %v259
  %v261 = vmul.f32 %v260, %v254
  %v262 = vtanh.pop %v261
  %v263 = vmul.f32 %v262, %v256
  %v264 = vadd.f32 %v250, %v263
  %v265 = vxor.u32 %v264, 2147483648
  %v266 = vmul.f32 %v265, 1.442695
  %v267 = vpow.pop %v266
  %v268 = vadd.f32 %v267, 1.0
  %v269 = vrcp.pop %v268
  %v270 = vmul.f32 1.0, %v269
  %v271 = vmul.f32 %v270, %v257
  %v272 = vsub.f32 %v250, %v262
  %v273 = vmul.f32 %v271, %v272
  %v274 = vadd.f32 %v262, %v273
  %v275 = vmax.f32 %v274, %v21
  %v276 = vmul.f32 %v275, %v255
  %v277 = vadd.f32 %v276, %v260
  %v279 = vrot.slane %v25, 7
  %v282 = vrot.slane %v52, 6
  %v285 = vrot.slane %v77, 5
  %v288 = vrot.slane %v102, 4
  %v291 = vrot.slane %v127, 3
  %v294 = vrot.slane %v152, 2
  %v297 = vrot.slane %v177, 1
  %v300 = vrot.slane %v227, 7
  %v303 = vrot.slane %v252, 6
  %v306 = vrot.slane %v277, 5
  %vm308 = vcmask 1040384
  %v309 = vsel %vm308, %v18, %v279
  %vm310 = vcmask 1041408
  %v311 = vsel %vm310, %v309, %v282
  %vm312 = vcmask 1042432
  %v313 = vsel %vm312, %v311, %v285
  %vm314 = vcmask 1043456
  %v315 = vsel %vm314, %v313, %v288
  %vm316 = vcmask 1044480
  %v317 = vsel %vm316, %v315, %v291
  %vm318 = vcmask 1045504
  %v319 = vsel %vm318, %v317, %v294
  %vm320 = vcmask 1046528
  %v321 = vsel %vm320, %v319, %v297
  %v322 = vsel %vm308, %v202, %v300
  %v323 = vsel %vm310, %v322, %v303
  %v324 = vsel %vm312, %v323, %v306
  %v325 = vld [vmem:[%s2] sm:$0x1]
  %v327 = vlaneseq
  %v328 = vshrl.u32 %v327, 7
  %v329 = vsub.s32 0, %v328
  %v330 = vrot.slane %v325, %v329
  %v332 = vmul.f32 %v321, %v330
  %v333 = vmul.f32 %v324, %v330
  %vm334 = vcmask 261120
  %v335 = vsel %vm334, %v332, 0.0
  %336 = vadd.xlane.f32.xlu0 %v335
  %v337 = vpop.xlane.xlu0 %336
  %vm338 = vcmask 257024
  %v339 = vsel %vm338, %v333, 0.0
  %340 = vadd.xlane.f32.xlu0 %v339
  %v341 = vpop.xlane.xlu0 %340
  %s342 = sld [smem:[#allocation2]]
  %v343 = vstv %s342
  %v344 = vadd.f32 %v337, %v343
  %v345 = vadd.f32 %v341, %v343
  %v346 = vxor.u32 %v344, 2147483648
  %v347 = vxor.u32 %v345, 2147483648
  %v348 = vmul.f32 %v346, 1.442695
  %v349 = vpow.pop %v348
  %v350 = vmul.f32 %v347, 1.442695
  %v351 = vpow.pop %v350
  %v352 = vadd.f32 %v349, 1.0
  %v353 = vadd.f32 %v351, 1.0
  %v354 = vrcp.pop %v352
  %v355 = vmul.f32 1.0, %v354
  %v356 = vrcp.pop %v353
  %v357 = vmul.f32 1.0, %v356
  %vm358 = vcmask 7168
  %359 = vst.msk [vmem:[%s4] sm:$0xff] %vm358, %v355
  %vm360 = vcmask 3072
  %361 = vst.msk [vmem:[%s4 + $0x8] sm:$0xf] %vm360, %v357
  // Predicated region
  $region18: #{tpu_custom_call.1} parent=0 // pred_check
    _
  $region19: #{tpu_custom_call.1} parent=0 // pred_check_branch
    %363 = sbr.rel (0) target = $region21
  $region20: #{tpu_custom_call.1} parent=0 // pred_region
    _
  $region21: #{tpu_custom_call.1} parent=0 // pred_fallthru
    _
  // Predicated region
  $region22: #{tpu_custom_call.1} parent=0 // pred_check
    _
  $region23: #{tpu_custom_call.1} parent=0 // pred_check_branch
    %365 = sbr.rel (0) target = $region25
  $region24: #{tpu_custom_call.1} parent=0 // pred_region
    _
  $region25: #{tpu_custom_call.1} parent=0 // pred_fallthru
    _

</llo_original>
